<compile_context>
chip_gen: v6e
topology: v6e:2x2x1
jax: 0.10.0
libtpu: 0.0.40
codegen_flags: <defaults>
</compile_context>

<pallas_src>
import jax
import jax.numpy as jnp
from jax.experimental import pallas as pl
from jax.experimental.pallas import tpu as pltpu

_LANES = 128
_LAYER_NAMES = ("1", "2", "3", "31", "32", "33", "4", "5")


def _round_up(x, m):
    return (x + m - 1) // m * m


def _layer_dims(D_in, H, H2, D_out):
    # (in_features, out_features) per layer, in forward order.
    return [(D_in, H), (H, H2), (H2, H2), (H2, H2), (H2, H2), (H2, H2),
            (H2, H), (H, D_out)]


def pack_params(params, D_in, H, H2, D_out, weight_dtype=jnp.bfloat16):
    """Pack the 8 (weight, bias) pairs into two grid-invariant VMEM slabs.

    Call once per parameter set (outside the per-step hot path). Layer row
    offsets are aligned to the weight dtype's sublane tile (16 rows for bf16)
    so every in-kernel static slice is tile-aligned.
    """
    dims = _layer_dims(D_in, H, H2, D_out)
    assert all(fout <= _LANES for _, fout in dims), "layer widths must be <= 128"

    itemsize = jnp.dtype(weight_dtype).itemsize
    row_align = 8 * max(1, 4 // itemsize)          # f32 -> 8, bf16 -> 16
    fin_pads = [_round_up(fin, row_align) for fin, _ in dims]
    d_out_pad = _round_up(dims[-1][1], 8)

    offsets, r = [], 0
    for fp in fin_pads:
        offsets.append(r)
        r += fp

    w_blocks, b_rows = [], []
    for name, (fin, fout), fp in zip(_LAYER_NAMES, dims, fin_pads):
        w = params["w" + name].astype(weight_dtype)
        w_blocks.append(jnp.pad(w, ((0, fp - fin), (0, _LANES - fout))))
        b = params["b" + name].reshape(1, -1).astype(jnp.float32)
        b_rows.append(jnp.pad(b, ((0, 0), (0, _LANES - fout))))
    w_slab = jnp.concatenate(w_blocks, axis=0)     # (total_rows, 128) bf16
    b_slab = jnp.concatenate(b_rows, axis=0)       # (8, 128) f32

    layer_slices = tuple(
        (off, fp, (d_out_pad if i == len(dims) - 1 else fout))
        for i, (off, fp, (_, fout)) in enumerate(zip(offsets, fin_pads, dims)))

    return dict(
        w_slab=w_slab, b_slab=b_slab, layer_slices=layer_slices,
        dims=tuple(dims), d_in=D_in, d_in_pad=fin_pads[0],
        d_out=D_out, d_out_pad=d_out_pad, weight_dtype=weight_dtype)


def _make_kernel(layer_slices, weight_dtype):
    n_layers = len(layer_slices)

    def kernel(alpha_ref, x_ref, w_ref, b_ref, o_ref):
        a = alpha_ref[0]                       # shared PReLU slope (SMEM scalar)
        h = x_ref[...]                         # (tb, D_in_pad), already bf16
        for li, (off, fin_p, cols) in enumerate(layer_slices):
            w = w_ref[off:off + fin_p, :cols]  # tile-aligned static slice
            z = jnp.dot(h.astype(weight_dtype), w,
                        preferred_element_type=jnp.float32)
            z = z + b_ref[li:li + 1, :cols]    # (1, cols) f32 bias broadcast
            if li == n_layers - 1:
                o_ref[...] = z.astype(o_ref.dtype)   # narrow (tb, D_out_pad) store
            else:
                # Element-wise path kept in f32 (required on v5e; optional bf16
                # on v6e/v7x gives only a marginal win at this size).
                h = jnp.where(z > 0, z, a * z)

    return kernel


def bpnet20_forward(x, packed, alpha, *, tb=1024):
    """Fused MLP forward using pre-packed weight/bias slabs."""
    B, D_in = x.shape
    assert D_in == packed["d_in"], "input feature dim mismatch"
    weight_dtype = packed["weight_dtype"]
    w_slab, b_slab = packed["w_slab"], packed["b_slab"]
    d_in_pad = packed["d_in_pad"]
    d_out, d_out_pad = packed["d_out"], packed["d_out_pad"]

    # Batch tiling: large tiles amortize the ~0.35us per-grid-step overhead,
    # but guarantee >= 2 grid steps whenever B allows it so v7x megacore
    # sharding ("parallel" batch axis) keeps both TensorCores busy, and tail
    # padding stays bounded.
    half = _round_up(max(1, -(-B // 2)), 8)
    tb_eff = max(8, min(_round_up(tb, 8), half))
    B_pad = _round_up(B, tb_eff)

    # bf16 input: halves input DMA and removes the in-kernel cast round-trip.
    x_pad = jnp.pad(x.astype(weight_dtype),
                    ((0, B_pad - B), (0, d_in_pad - D_in)))

    kernel = _make_kernel(packed["layer_slices"], weight_dtype)

    flops = 2 * B_pad * sum(fin * fout for fin, fout in packed["dims"])
    bytes_accessed = (x_pad.size * x_pad.dtype.itemsize
                      + w_slab.size * w_slab.dtype.itemsize
                      + b_slab.size * b_slab.dtype.itemsize
                      + alpha.size * alpha.dtype.itemsize
                      + B_pad * d_out_pad * 4)

    out_padded = pl.pallas_call(
        kernel,
        out_shape=jax.ShapeDtypeStruct((B_pad, d_out_pad), jnp.float32),
        grid=(B_pad // tb_eff,),
        in_specs=[
            pl.BlockSpec(memory_space=pltpu.MemorySpace.SMEM),    # PReLU alpha
            pl.BlockSpec((tb_eff, d_in_pad), lambda i: (i, 0)),   # x batch tile
            pl.BlockSpec(w_slab.shape, lambda i: (0, 0)),         # packed weights
            pl.BlockSpec(b_slab.shape, lambda i: (0, 0)),         # packed biases
        ],
        out_specs=pl.BlockSpec((tb_eff, d_out_pad), lambda i: (i, 0)),
        compiler_params=pltpu.CompilerParams(
            dimension_semantics=("parallel",)),
        cost_estimate=pl.CostEstimate(
            flops=flops, transcendentals=0, bytes_accessed=bytes_accessed),
    )(alpha, x_pad, w_slab, b_slab)

    return out_padded[:B, :d_out]


def init_params(key, D_in, H, H2, D_out):
    """Deterministic init mimicking nn.Linear's U(-1/sqrt(fan_in), 1/sqrt(fan_in))."""
    params = {}
    for name, (fin, fout) in zip(_LAYER_NAMES, _layer_dims(D_in, H, H2, D_out)):
        key, kw, kb = jax.random.split(key, 3)
        bound = 1.0 / float(fin) ** 0.5
        params["w" + name] = jax.random.uniform(kw, (fin, fout), jnp.float32,
                                                -bound, bound)
        params["b" + name] = jax.random.uniform(kb, (1, fout), jnp.float32,
                                                -bound, bound)
    return params


def reference_forward(x, params, alpha, weight_dtype=jnp.bfloat16):
    """Pure-JAX reference mirroring the kernel numerics (bf16 matmul, f32 acc)."""
    # NOTE: matmuls run in bf16 like the kernel; this will not bit-match a
    # pure-f32 PyTorch forward (pass weight_dtype=jnp.float32 to pack_params
    # and here if full f32 parity is required).
    a = alpha[0]
    h = x.astype(jnp.float32)
    for name in _LAYER_NAMES[:-1]:
        z = jnp.dot(h.astype(weight_dtype),
                    params["w" + name].astype(weight_dtype),
                    preferred_element_type=jnp.float32) + params["b" + name]
        h = jnp.where(z > 0, z, a * z)
    return jnp.dot(h.astype(weight_dtype),
                   params["w5"].astype(weight_dtype),
                   preferred_element_type=jnp.float32) + params["b5"]


# TODO(synk): loss_fn (MSELoss), cosloss (CosineEmbeddingLoss) and the Adam
# optimizer are training-only members and are not part of the forward pass.

if __name__ == "__main__":
    # Shapes consistent with the module: D_in=20 ("20bit"), H=32, H2=64, D_out=4.
    D_in, H, H2, D_out = 20, 32, 64, 4

    key = jax.random.PRNGKey(0)
    key, kx1, kx2 = jax.random.split(key, 3)
    params = init_params(key, D_in, H, H2, D_out)
    alpha = jnp.full((1,), 0.25, jnp.float32)     # PyTorch nn.PReLU default init

    packed = pack_params(params, D_in, H, H2, D_out)   # pack once, reuse

    # Small demo batch.
    x_small = jax.random.normal(kx1, (16, D_in), jnp.float32)
    out_small = jax.block_until_ready(bpnet20_forward(x_small, packed, alpha))
    ref_small = reference_forward(x_small, params, alpha)
    assert out_small.shape == (16, D_out)
    assert jnp.allclose(out_small, ref_small, atol=1e-4, rtol=1e-4), \
        "small-batch mismatch vs reference"

    # Larger, non-multiple-of-tile batch: exercises padding + multi-step grid.
    x_big = jax.random.normal(kx2, (1000, D_in), jnp.float32)
    out_big = jax.block_until_ready(
        bpnet20_forward(x_big, packed, alpha, tb=1024))
    ref_big = reference_forward(x_big, params, alpha)
    assert out_big.shape == (1000, D_out)
    assert jnp.allclose(out_big, ref_big, atol=1e-4, rtol=1e-4), \
        "large-batch mismatch vs reference"

    print("KERNEL_OK")
</pallas_src>

<mosaic_0001>
module attributes {stable_mosaic.version = 11 : i64} {
  func.func @kernel(%arg0: i32, %arg1: memref<1xf32, #tpu.memory_space<smem>>, %arg2: memref<8x32xbf16, #tpu.memory_space<vmem>>, %arg3: memref<416x128xbf16, #tpu.memory_space<vmem>>, %arg4: memref<8x128xf32, #tpu.memory_space<vmem>>, %arg5: memref<8x8xf32, #tpu.memory_space<vmem>>) attributes {dimension_semantics = [#tpu.dimension_semantics<parallel>], iteration_bounds = array<i64: 2>, scalar_prefetch = 0 : i64, scratch_operands = 0 : i64, tpu.core_type = #tpu.core_type<tc>, window_params = [{transform_indices = @transform_0, window_bounds = array<i64: 1>}, {transform_indices = @transform_1, window_bounds = array<i64: 8, 32>}, {pipeline_mode = #tpu.pipeline_mode<synchronous>, transform_indices = @transform_2, window_bounds = array<i64: 416, 128>}, {pipeline_mode = #tpu.pipeline_mode<synchronous>, transform_indices = @transform_3, window_bounds = array<i64: 8, 128>}, {transform_indices = @transform_4, window_bounds = array<i64: 8, 8>}]} {
    %c0 = arith.constant 0 : index
    %0 = memref.load %arg1[%c0] : memref<1xf32, #tpu.memory_space<smem>>
    %c0_0 = arith.constant 0 : index
    %c0_1 = arith.constant 0 : index
    %1 = vector.load %arg2[%c0_0, %c0_1] : memref<8x32xbf16, #tpu.memory_space<vmem>>, vector<8x32xbf16>
    %c0_2 = arith.constant 0 : index
    %c0_3 = arith.constant 0 : index
    %2 = vector.load %arg3[%c0_2, %c0_3] : memref<416x128xbf16, #tpu.memory_space<vmem>>, vector<32x32xbf16>
    %cst = arith.constant dense<0.000000e+00> : vector<8x32xf32>
    %3 = tpu.matmul %1, %2, %cst {dimension_numbers = #tpu.dot_dimension_numbers<[1], [0], [0], [1], [0, 0, 1, 1], [], []>} : vector<8x32xbf16>, vector<32x32xbf16>, vector<8x32xf32> -> vector<8x32xf32>
    %c0_4 = arith.constant 0 : index
    %c0_5 = arith.constant 0 : index
    %4 = vector.load %arg4[%c0_4, %c0_5] : memref<8x128xf32, #tpu.memory_space<vmem>>, vector<1x32xf32>
    %5 = vector.broadcast %4 : vector<1x32xf32> to vector<8x32xf32>
    %6 = arith.addf %3, %5 : vector<8x32xf32>
    %cst_6 = arith.constant 0.000000e+00 : f32
    %7 = vector.broadcast %cst_6 : f32 to vector<8x32xf32>
    %8 = arith.cmpf ogt, %6, %7 : vector<8x32xf32>
    %9 = vector.broadcast %0 : f32 to vector<8x32xf32>
    %10 = arith.mulf %9, %6 : vector<8x32xf32>
    %11 = arith.select %8, %6, %10 : vector<8x32xi1>, vector<8x32xf32>
    %c32 = arith.constant 32 : index
    %c0_7 = arith.constant 0 : index
    %12 = vector.load %arg3[%c32, %c0_7] : memref<416x128xbf16, #tpu.memory_space<vmem>>, vector<32x64xbf16>
    %13 = arith.truncf %11 : vector<8x32xf32> to vector<8x32xbf16>
    %cst_8 = arith.constant dense<0.000000e+00> : vector<8x64xf32>
    %14 = tpu.matmul %13, %12, %cst_8 {dimension_numbers = #tpu.dot_dimension_numbers<[1], [0], [0], [1], [0, 0, 1, 1], [], []>} : vector<8x32xbf16>, vector<32x64xbf16>, vector<8x64xf32> -> vector<8x64xf32>
    %c1 = arith.constant 1 : index
    %c0_9 = arith.constant 0 : index
    %15 = vector.load %arg4[%c1, %c0_9] : memref<8x128xf32, #tpu.memory_space<vmem>>, vector<1x64xf32>
    %16 = vector.broadcast %15 : vector<1x64xf32> to vector<8x64xf32>
    %17 = arith.addf %14, %16 : vector<8x64xf32>
    %cst_10 = arith.constant 0.000000e+00 : f32
    %18 = vector.broadcast %cst_10 : f32 to vector<8x64xf32>
    %19 = arith.cmpf ogt, %17, %18 : vector<8x64xf32>
    %20 = vector.broadcast %0 : f32 to vector<8x64xf32>
    %21 = arith.mulf %20, %17 : vector<8x64xf32>
    %22 = arith.select %19, %17, %21 : vector<8x64xi1>, vector<8x64xf32>
    %c64 = arith.constant 64 : index
    %c0_11 = arith.constant 0 : index
    %23 = vector.load %arg3[%c64, %c0_11] : memref<416x128xbf16, #tpu.memory_space<vmem>>, vector<64x64xbf16>
    %24 = arith.truncf %22 : vector<8x64xf32> to vector<8x64xbf16>
    %cst_12 = arith.constant dense<0.000000e+00> : vector<8x64xf32>
    %25 = tpu.matmul %24, %23, %cst_12 {dimension_numbers = #tpu.dot_dimension_numbers<[1], [0], [0], [1], [0, 0, 1, 1], [], []>} : vector<8x64xbf16>, vector<64x64xbf16>, vector<8x64xf32> -> vector<8x64xf32>
    %c2 = arith.constant 2 : index
    %c0_13 = arith.constant 0 : index
    %26 = vector.load %arg4[%c2, %c0_13] : memref<8x128xf32, #tpu.memory_space<vmem>>, vector<1x64xf32>
    %27 = vector.broadcast %26 : vector<1x64xf32> to vector<8x64xf32>
    %28 = arith.addf %25, %27 : vector<8x64xf32>
    %cst_14 = arith.constant 0.000000e+00 : f32
    %29 = vector.broadcast %cst_14 : f32 to vector<8x64xf32>
    %30 = arith.cmpf ogt, %28, %29 : vector<8x64xf32>
    %31 = vector.broadcast %0 : f32 to vector<8x64xf32>
    %32 = arith.mulf %31, %28 : vector<8x64xf32>
    %33 = arith.select %30, %28, %32 : vector<8x64xi1>, vector<8x64xf32>
    %c128 = arith.constant 128 : index
    %c0_15 = arith.constant 0 : index
    %34 = vector.load %arg3[%c128, %c0_15] : memref<416x128xbf16, #tpu.memory_space<vmem>>, vector<64x64xbf16>
    %35 = arith.truncf %33 : vector<8x64xf32> to vector<8x64xbf16>
    %cst_16 = arith.constant dense<0.000000e+00> : vector<8x64xf32>
    %36 = tpu.matmul %35, %34, %cst_16 {dimension_numbers = #tpu.dot_dimension_numbers<[1], [0], [0], [1], [0, 0, 1, 1], [], []>} : vector<8x64xbf16>, vector<64x64xbf16>, vector<8x64xf32> -> vector<8x64xf32>
    %c3 = arith.constant 3 : index
    %c0_17 = arith.constant 0 : index
    %37 = vector.load %arg4[%c3, %c0_17] : memref<8x128xf32, #tpu.memory_space<vmem>>, vector<1x64xf32>
    %38 = vector.broadcast %37 : vector<1x64xf32> to vector<8x64xf32>
    %39 = arith.addf %36, %38 : vector<8x64xf32>
    %cst_18 = arith.constant 0.000000e+00 : f32
    %40 = vector.broadcast %cst_18 : f32 to vector<8x64xf32>
    %41 = arith.cmpf ogt, %39, %40 : vector<8x64xf32>
    %42 = vector.broadcast %0 : f32 to vector<8x64xf32>
    %43 = arith.mulf %42, %39 : vector<8x64xf32>
    %44 = arith.select %41, %39, %43 : vector<8x64xi1>, vector<8x64xf32>
    %c192 = arith.constant 192 : index
    %c0_19 = arith.constant 0 : index
    %45 = vector.load %arg3[%c192, %c0_19] : memref<416x128xbf16, #tpu.memory_space<vmem>>, vector<64x64xbf16>
    %46 = arith.truncf %44 : vector<8x64xf32> to vector<8x64xbf16>
    %cst_20 = arith.constant dense<0.000000e+00> : vector<8x64xf32>
    %47 = tpu.matmul %46, %45, %cst_20 {dimension_numbers = #tpu.dot_dimension_numbers<[1], [0], [0], [1], [0, 0, 1, 1], [], []>} : vector<8x64xbf16>, vector<64x64xbf16>, vector<8x64xf32> -> vector<8x64xf32>
    %c4 = arith.constant 4 : index
    %c0_21 = arith.constant 0 : index
    %48 = vector.load %arg4[%c4, %c0_21] : memref<8x128xf32, #tpu.memory_space<vmem>>, vector<1x64xf32>
    %49 = vector.broadcast %48 : vector<1x64xf32> to vector<8x64xf32>
    %50 = arith.addf %47, %49 : vector<8x64xf32>
    %cst_22 = arith.constant 0.000000e+00 : f32
    %51 = vector.broadcast %cst_22 : f32 to vector<8x64xf32>
    %52 = arith.cmpf ogt, %50, %51 : vector<8x64xf32>
    %53 = vector.broadcast %0 : f32 to vector<8x64xf32>
    %54 = arith.mulf %53, %50 : vector<8x64xf32>
    %55 = arith.select %52, %50, %54 : vector<8x64xi1>, vector<8x64xf32>
    %c256 = arith.constant 256 : index
    %c0_23 = arith.constant 0 : index
    %56 = vector.load %arg3[%c256, %c0_23] : memref<416x128xbf16, #tpu.memory_space<vmem>>, vector<64x64xbf16>
    %57 = arith.truncf %55 : vector<8x64xf32> to vector<8x64xbf16>
    %cst_24 = arith.constant dense<0.000000e+00> : vector<8x64xf32>
    %58 = tpu.matmul %57, %56, %cst_24 {dimension_numbers = #tpu.dot_dimension_numbers<[1], [0], [0], [1], [0, 0, 1, 1], [], []>} : vector<8x64xbf16>, vector<64x64xbf16>, vector<8x64xf32> -> vector<8x64xf32>
    %c5 = arith.constant 5 : index
    %c0_25 = arith.constant 0 : index
    %59 = vector.load %arg4[%c5, %c0_25] : memref<8x128xf32, #tpu.memory_space<vmem>>, vector<1x64xf32>
    %60 = vector.broadcast %59 : vector<1x64xf32> to vector<8x64xf32>
    %61 = arith.addf %58, %60 : vector<8x64xf32>
    %cst_26 = arith.constant 0.000000e+00 : f32
    %62 = vector.broadcast %cst_26 : f32 to vector<8x64xf32>
    %63 = arith.cmpf ogt, %61, %62 : vector<8x64xf32>
    %64 = vector.broadcast %0 : f32 to vector<8x64xf32>
    %65 = arith.mulf %64, %61 : vector<8x64xf32>
    %66 = arith.select %63, %61, %65 : vector<8x64xi1>, vector<8x64xf32>
    %c320 = arith.constant 320 : index
    %c0_27 = arith.constant 0 : index
    %67 = vector.load %arg3[%c320, %c0_27] : memref<416x128xbf16, #tpu.memory_space<vmem>>, vector<64x32xbf16>
    %68 = arith.truncf %66 : vector<8x64xf32> to vector<8x64xbf16>
    %cst_28 = arith.constant dense<0.000000e+00> : vector<8x32xf32>
    %69 = tpu.matmul %68, %67, %cst_28 {dimension_numbers = #tpu.dot_dimension_numbers<[1], [0], [0], [1], [0, 0, 1, 1], [], []>} : vector<8x64xbf16>, vector<64x32xbf16>, vector<8x32xf32> -> vector<8x32xf32>
    %c6 = arith.constant 6 : index
    %c0_29 = arith.constant 0 : index
    %70 = vector.load %arg4[%c6, %c0_29] : memref<8x128xf32, #tpu.memory_space<vmem>>, vector<1x32xf32>
    %71 = vector.broadcast %70 : vector<1x32xf32> to vector<8x32xf32>
    %72 = arith.addf %69, %71 : vector<8x32xf32>
    %cst_30 = arith.constant 0.000000e+00 : f32
    %73 = vector.broadcast %cst_30 : f32 to vector<8x32xf32>
    %74 = arith.cmpf ogt, %72, %73 : vector<8x32xf32>
    %75 = vector.broadcast %0 : f32 to vector<8x32xf32>
    %76 = arith.mulf %75, %72 : vector<8x32xf32>
    %77 = arith.select %74, %72, %76 : vector<8x32xi1>, vector<8x32xf32>
    %c384 = arith.constant 384 : index
    %c0_31 = arith.constant 0 : index
    %78 = vector.load %arg3[%c384, %c0_31] : memref<416x128xbf16, #tpu.memory_space<vmem>>, vector<32x8xbf16>
    %79 = arith.truncf %77 : vector<8x32xf32> to vector<8x32xbf16>
    %cst_32 = arith.constant dense<0.000000e+00> : vector<8x8xf32>
    %80 = tpu.matmul %79, %78, %cst_32 {dimension_numbers = #tpu.dot_dimension_numbers<[1], [0], [0], [1], [0, 0, 1, 1], [], []>} : vector<8x32xbf16>, vector<32x8xbf16>, vector<8x8xf32> -> vector<8x8xf32>
    %c7 = arith.constant 7 : index
    %c0_33 = arith.constant 0 : index
    %81 = vector.load %arg4[%c7, %c0_33] : memref<8x128xf32, #tpu.memory_space<vmem>>, vector<1x8xf32>
    %82 = vector.broadcast %81 : vector<1x8xf32> to vector<8x8xf32>
    %83 = arith.addf %80, %82 : vector<8x8xf32>
    %c0_34 = arith.constant 0 : index
    %c0_35 = arith.constant 0 : index
    %84 = vector.load %arg5[%c0_34, %c0_35] : memref<8x8xf32, #tpu.memory_space<vmem>>, vector<8x8xf32>
    tpu.vector_store %arg5[%c0_34, %c0_35], %83 {strides = array<i32>} : memref<8x8xf32, #tpu.memory_space<vmem>>, vector<8x8xf32>,
    return
  }
  func.func @transform_0(%arg0: i32) -> i32 {
    %c0_i32 = arith.constant 0 : i32
    %c0_i32_0 = arith.constant 0 : i32
    return %c0_i32 : i32
  }
  func.func @transform_1(%arg0: i32) -> (i32, i32) {
    %c0_i32 = arith.constant 0 : i32
    %c0_i32_0 = arith.constant 0 : i32
    return %arg0, %c0_i32 : i32, i32
  }
  func.func @transform_2(%arg0: i32) -> (i32, i32) {
    %c0_i32 = arith.constant 0 : i32
    %c0_i32_0 = arith.constant 0 : i32
    %c0_i32_1 = arith.constant 0 : i32
    return %c0_i32, %c0_i32_0 : i32, i32
  }
  func.func @transform_3(%arg0: i32) -> (i32, i32) {
    %c0_i32 = arith.constant 0 : i32
    %c0_i32_0 = arith.constant 0 : i32
    %c0_i32_1 = arith.constant 0 : i32
    return %c0_i32, %c0_i32_0 : i32, i32
  }
  func.func @transform_4(%arg0: i32) -> (i32, i32) {
    %c0_i32 = arith.constant 0 : i32
    %c0_i32_0 = arith.constant 0 : i32
    return %arg0, %c0_i32 : i32, i32
  }
}

</mosaic_0001>

<llo_original>
// kernel: tpu_custom_call.1
$region0: #{tpu_custom_call.1}
  #allocation0 [shape = 'u32[]', space=smem, size = 0x4, offset = 0x4, fixed_abs, tag = 'smem constant byte address 0x4 - core index']
  #allocation1 [shape = 'u32[144,128]{1,0:T(1,128)}', space=vmem, size = 0x12000, scoped, tag = 'internal scratch']
  #allocation2 [shape = 'f32[1]{0:T(128)S(6)}', space=smem, size = 0x200, scoped, tag = 'scoped memory for tpu_custom_call.1']
  %s0 = inlined_call_operand.<no memory space> [shape: f32[1], index: 0, kind: input, shape index: {}]
  %s1 = inlined_call_operand.hbm [shape: bf16[16,32], index: 1, kind: input, shape index: {}]
  %s2 = inlined_call_operand.hbm [shape: bf16[416,128], index: 2, kind: input, shape index: {}]
  %s3 = inlined_call_operand.hbm [shape: f32[8,128], index: 3, kind: input, shape index: {}]
  %s4 = inlined_call_operand.vmem [shape: f32[16,8], index: 4, kind: output, shape index: {}]
  %s5 = sld [smem:[#allocation0]]
  $region61: #{tpu_custom_call.1} parent=0
    _
  %s7 = ssub.s32 1, %s5
  %s8 = scalar_select 0, %s7, %s5
  %9 = sst [smem:[#allocation2]] %s0
  $region1: #{tpu_custom_call.1} parent=0
    #allocation3 [shape = 'u8[4096]{0}', space=vmem, size = 0x1000, scoped, tag = 'input window, operand 1']
    #allocation4 [shape = 's32[2]{0}', space=sflag, size = 0x8, scoped, tag = 'scoped memory for tpu_custom_call.1']
    #allocation5 [shape = 'u8[106496]{0}', space=vmem, size = 0x1a000, scoped, tag = 'input window, operand 2, single buffered']
    #allocation6 [shape = 's32[1]{0}', space=sflag, size = 0x4, scoped, tag = 'scoped memory for tpu_custom_call.1']
    #allocation7 [shape = 'u8[4096]{0}', space=vmem, size = 0x1000, scoped, tag = 'input window, operand 3, single buffered']
    %10 = vsyncpa [#allocation4], 0
    %s11 = scalar_lea.sflag [#allocation4], 1
    %12 = vsyncpa %s11, 0
    %13 = vsyncpa [#allocation6], 0
    loop: start=0, step=1, limit=4
    $region2: #{tpu_custom_call.1} parent=1 // loop_pre_header
      _
    $region3: #{tpu_custom_call.1} parent=1 // loop_header
      %s15 = sphi 0, %s19
      %p16 = scmp.ge.s32.totalorder %s15, 4
      %s23 = sphi 0, %s23
      %s25 = sphi 0, %s23
      %s26 = sphi 0, %s25
      %s40 = sphi 0, %s26
      %s46 = sphi 0, %s48
      %s49 = sphi 0, %s46
      %s50 = sphi 0, %s49
      %s66 = sphi 0, %s50
      %s70 = sphi 0, %s70
      %s72 = sphi 0, %s70
      %s73 = sphi 0, %s72
      %s87 = sphi 0, %s73
      %s91 = sphi 0, %s91
      %s93 = sphi 0, %s91
      %s94 = sphi 0, %s93
      %s108 = sphi 0, %s94
      %s114 = sphi 0, %s116
      %s117 = sphi 0, %s114
      %s118 = sphi 0, %s117
      %s134 = sphi 0, %s118
    $region4: #{tpu_custom_call.1} parent=1 // loop_header_branch
      %18 = sbr.rel (%p16) target = $region8
    $region5: #{tpu_custom_call.1} parent=1 // loop_body
      %s20 = ssub.s32 %s15, 1
      %s21 = ssub.s32 %s15, 2
      %s22 = sadd.s32 %s15, 1
      %s24 = sadd.s32 %s23, 1
      %p27 = scmp.eq.s32.totalorder %s15, 1
      %p28 = scmp.ne.s32.totalorder %s23, %s25
      %p29 = scmp.eq.s32.totalorder %s15, 0
      %p30 = por %p28, %p29
      %p31 = scmp.ne.s32.totalorder %s23, %s25
      %p32 = scmp.eq.s32.totalorder %s20, 1
      %p33 = por %p31, %p32
      %p34 = scmp.ne.s32.totalorder %s25, %s26
      %p35 = scmp.eq.s32.totalorder %s20, 0
      %p36 = por %p34, %p35
      %p37 = scmp.ne.s32.totalorder %s25, %s26
      %p38 = scmp.eq.s32.totalorder %s21, 1
      %p39 = por %p37, %p38
      %p41 = scmp.ne.s32.totalorder %s26, %s40
      %p42 = scmp.eq.s32.totalorder %s21, 0
      %p43 = por %p41, %p42
      %s44 = ssub.s32 %s15, %s22
      %p45 = scmp.eq.s32.totalorder %s44, 0
      %s47 = sadd.s32 %s46, 1
      %s48 = scalar_select %p45, %s46, %s47
      %p51 = pneg %p45
      %p52 = scmp.eq.s32.totalorder %s15, 1
      %p53 = por %p51, %p52
      %p54 = scmp.ne.s32.totalorder %s46, %s49
      %p55 = scmp.eq.s32.totalorder %s15, 0
      %p56 = por %p54, %p55
      %p57 = scmp.ne.s32.totalorder %s46, %s49
      %p58 = scmp.eq.s32.totalorder %s20, 1
      %p59 = por %p57, %p58
      %p60 = scmp.ne.s32.totalorder %s49, %s50
      %p61 = scmp.eq.s32.totalorder %s20, 0
      %p62 = por %p60, %p61
      %p63 = scmp.ne.s32.totalorder %s49, %s50
      %p64 = scmp.eq.s32.totalorder %s21, 1
      %p65 = por %p63, %p64
      %p67 = scmp.ne.s32.totalorder %s50, %s66
      %p68 = scmp.eq.s32.totalorder %s21, 0
      %p69 = por %p67, %p68
      %s71 = sadd.s32 %s70, 1
      %p74 = scmp.eq.s32.totalorder %s15, 1
      %p75 = scmp.ne.s32.totalorder %s70, %s72
      %p76 = scmp.eq.s32.totalorder %s15, 0
      %p77 = por %p75, %p76
      %p78 = scmp.ne.s32.totalorder %s70, %s72
      %p79 = scmp.eq.s32.totalorder %s20, 1
      %p80 = por %p78, %p79
      %p81 = scmp.ne.s32.totalorder %s72, %s73
      %p82 = scmp.eq.s32.totalorder %s20, 0
      %p83 = por %p81, %p82
      %p84 = scmp.ne.s32.totalorder %s72, %s73
      %p85 = scmp.eq.s32.totalorder %s21, 1
      %p86 = por %p84, %p85
      %p88 = scmp.ne.s32.totalorder %s73, %s87
      %p89 = scmp.eq.s32.totalorder %s21, 0
      %p90 = por %p88, %p89
      %s92 = sadd.s32 %s91, 1
      %p95 = scmp.eq.s32.totalorder %s15, 1
      %p96 = scmp.ne.s32.totalorder %s91, %s93
      %p97 = scmp.eq.s32.totalorder %s15, 0
      %p98 = por %p96, %p97
      %p99 = scmp.ne.s32.totalorder %s91, %s93
      %p100 = scmp.eq.s32.totalorder %s20, 1
      %p101 = por %p99, %p100
      %p102 = scmp.ne.s32.totalorder %s93, %s94
      %p103 = scmp.eq.s32.totalorder %s20, 0
      %p104 = por %p102, %p103
      %p105 = scmp.ne.s32.totalorder %s93, %s94
      %p106 = scmp.eq.s32.totalorder %s21, 1
      %p107 = por %p105, %p106
      %p109 = scmp.ne.s32.totalorder %s94, %s108
      %p110 = scmp.eq.s32.totalorder %s21, 0
      %p111 = por %p109, %p110
      %s112 = ssub.s32 %s15, %s22
      %p113 = scmp.eq.s32.totalorder %s112, 0
      %s115 = sadd.s32 %s114, 1
      %s116 = scalar_select %p113, %s114, %s115
      %p119 = pneg %p113
      %p120 = scmp.eq.s32.totalorder %s15, 1
      %p121 = por %p119, %p120
      %p122 = scmp.ne.s32.totalorder %s114, %s117
      %p123 = scmp.eq.s32.totalorder %s15, 0
      %p124 = por %p122, %p123
      %p125 = scmp.ne.s32.totalorder %s114, %s117
      %p126 = scmp.eq.s32.totalorder %s20, 1
      %p127 = por %p125, %p126
      %p128 = scmp.ne.s32.totalorder %s117, %s118
      %p129 = scmp.eq.s32.totalorder %s20, 0
      %p130 = por %p128, %p129
      %p131 = scmp.ne.s32.totalorder %s117, %s118
      %p132 = scmp.eq.s32.totalorder %s21, 1
      %p133 = por %p131, %p132
      %p135 = scmp.ne.s32.totalorder %s118, %s134
      %p136 = scmp.eq.s32.totalorder %s21, 0
      %p137 = por %p135, %p136
      %p138 = scmp.le.s32.totalorder 1, %s15
      %p139 = scmp.lt.s32.totalorder %s15, 3
      %p140 = pnand %p138, %p139
      %p141 = pneg %p140
      // Predicated region
      $region9: #{tpu_custom_call.1} parent=5 // pred_check
        _
      $region10: #{tpu_custom_call.1} parent=5 // pred_check_branch
        %143 = sbr.rel (%p140) target = $region12
      $region11: #{tpu_custom_call.1} parent=5 // pred_region
        %s144 = ssub.s32 %s15, 1
        // Predicated region
        $region13: #{tpu_custom_call.1} parent=11 // pred_check
          %p145 = pneg %p36
        $region14: #{tpu_custom_call.1} parent=11 // pred_check_branch
          %147 = sbr.rel (%p145) target = $region16
        $region15: #{tpu_custom_call.1} parent=11 // pred_region
          _
        $region16: #{tpu_custom_call.1} parent=11 // pred_fallthru
          _
        // Predicated region
        $region17: #{tpu_custom_call.1} parent=11 // pred_check
          %p148 = pneg %p83
        $region18: #{tpu_custom_call.1} parent=11 // pred_check_branch
          %150 = sbr.rel (%p148) target = $region20
        $region19: #{tpu_custom_call.1} parent=11 // pred_region
          %s152 = ssub.s32 3328, 3328
          %153 = vsyncadd [#allocation6], %s152
          %s154 = sshll.u32 [#allocation5], 4
          %s155 = int_to_ptr.vmem [resolvable:$true] %s154
          %160 = dma.hbm_to_vmem [thread:$0]  %s2, 3328, %s155, [#allocation6], 64, 64, 4
        $region20: #{tpu_custom_call.1} parent=11 // pred_fallthru
          _
        // Predicated region
        $region21: #{tpu_custom_call.1} parent=11 // pred_check
          %p161 = pneg %p104
        $region22: #{tpu_custom_call.1} parent=11 // pred_check_branch
          %163 = sbr.rel (%p161) target = $region24
        $region23: #{tpu_custom_call.1} parent=11 // pred_region
          %s165 = ssub.s32 128, 128
          %166 = vsyncadd [#allocation6], %s165
          %s168 = sshll.u32 [#allocation7], 4
          %s169 = int_to_ptr.vmem [resolvable:$true] %s168
          %171 = dma.hbm_to_vmem [thread:$0]  %s3, 128, %s169, [#allocation6]
        $region24: #{tpu_custom_call.1} parent=11 // pred_fallthru
          _
      $region12: #{tpu_custom_call.1} parent=5 // pred_fallthru
        _
      %p172 = scmp.lt.s32.totalorder %s15, 2
      // Predicated region
      $region25: #{tpu_custom_call.1} parent=5 // pred_check
        %p173 = pneg %p172
      $region26: #{tpu_custom_call.1} parent=5 // pred_check_branch
        %175 = sbr.rel (%p173) target = $region28
      $region27: #{tpu_custom_call.1} parent=5 // pred_region
        // Predicated region
        $region29: #{tpu_custom_call.1} parent=27 // pred_check
          %p176 = pneg %p56
        $region30: #{tpu_custom_call.1} parent=27 // pred_check_branch
          %178 = sbr.rel (%p176) target = $region32
        $region31: #{tpu_custom_call.1} parent=27 // pred_region
          %s179 = sand.u32 %s46, 1
          %s180 = scalar_lea.sflag [#allocation4], %s179
          %s181 = sand.u32 %s46, 1
          %s182 = smul.addr %s181, 4
          %s183 = scalar_lea.vmem [#allocation3], %s182
          %s185 = ssub.s32 64, 64
          %186 = vsyncadd %s180, %s185
          %s187 = smul.addr %s15, 64
          %s188 = scalar_lea.hbm %s1, %s187
          %s190 = sshll.u32 %s183, 4
          %s191 = int_to_ptr.vmem [resolvable:$true] %s190
          %193 = dma.hbm_to_vmem [thread:$0]  %s188, 64, %s191, %s180
        $region32: #{tpu_custom_call.1} parent=27 // pred_fallthru
          _
      $region28: #{tpu_custom_call.1} parent=5 // pred_fallthru
        _
      %p194 = scmp.le.s32.totalorder 1, %s15
      %p195 = scmp.lt.s32.totalorder %s15, 3
      %p196 = pnand %p194, %p195
      %p197 = pneg %p196
      // Predicated region
      $region33: #{tpu_custom_call.1} parent=5 // pred_check
        _
      $region34: #{tpu_custom_call.1} parent=5 // pred_check_branch
        %199 = sbr.rel (%p196) target = $region36
      $region35: #{tpu_custom_call.1} parent=5 // pred_region
        %s200 = ssub.s32 %s15, 1
        %s201 = sand.u32 %s49, 1
        %s202 = scalar_lea.sflag [#allocation4], %s201
        %s203 = sand.u32 %s49, 1
        %s204 = smul.addr %s203, 4
        %s205 = scalar_lea.vmem [#allocation3], %s204
        // Predicated region
        $region37: #{tpu_custom_call.1} parent=35 // pred_check
          %p206 = pneg %p62
        $region38: #{tpu_custom_call.1} parent=35 // pred_check_branch
          %208 = sbr.rel (%p206) target = $region40
        $region39: #{tpu_custom_call.1} parent=35 // pred_region
          %209 = dma.done %s202, 64
        $region40: #{tpu_custom_call.1} parent=35 // pred_fallthru
          _
        // Predicated region
        $region41: #{tpu_custom_call.1} parent=35 // pred_check
          %p210 = pneg %p83
        $region42: #{tpu_custom_call.1} parent=35 // pred_check_branch
          %212 = sbr.rel (%p210) target = $region44
        $region43: #{tpu_custom_call.1} parent=35 // pred_region
          %213 = dma.done [#allocation6], 3328
        $region44: #{tpu_custom_call.1} parent=35 // pred_fallthru
          _
        // Predicated region
        $region45: #{tpu_custom_call.1} parent=35 // pred_check
          %p214 = pneg %p104
        $region46: #{tpu_custom_call.1} parent=35 // pred_check_branch
          %216 = sbr.rel (%p214) target = $region48
        $region47: #{tpu_custom_call.1} parent=35 // pred_region
          %217 = dma.done [#allocation6], 128
        $region48: #{tpu_custom_call.1} parent=35 // pred_fallthru
          _
        %p218 = pneg %p36
        %p219 = pneg %p33
        %s220 = sand.u32 %s49, 1
        %s221 = scalar_lea.sflag [#allocation4], %s220
        %s222 = sand.u32 %s49, 1
        %s223 = smul.addr %s222, 4
        %s224 = scalar_lea.vmem [#allocation3], %s223
        %p225 = pneg %p62
        %p226 = pneg %p59
        %p227 = pneg %p83
        %p228 = pneg %p80
        %p229 = pneg %p104
        %p230 = pneg %p101
        %p231 = pneg %p130
        %p232 = pneg %p127
        %p233 = scmp.lt.s32.totalorder %s20, 1
        %s234 = scalar_select %p233, %s20, 1
        %s235 = smul.addr %s234, 8
        %s236 = scalar_lea.vmem %s4, %s235
        %p237 = scmp.lt.s32.totalorder %s20, 1
        %s238 = scalar_select %p237, %s20, 1
        %s239 = smul.addr %s238, 8
        %s240 = scalar_lea.vmem %s4, %s239
        %s242 = sld [smem:[#allocation2]]
        %v243 = vld [vmem:[%s205] sm:$0xf]
        %v244 = vld [vmem:[#allocation5] sm:$0xf]
        %v245 = vld [vmem:[#allocation5 + $0x4] sm:$0xf]
        %v246 = vld [vmem:[#allocation5 + $0x8] sm:$0xf]
        %v247 = vld [vmem:[#allocation5 + $0xc] sm:$0xf]
        %v248 = vld [vmem:[#allocation7] sm:$0x1]
        %v249 = vlaneseq
        %v250 = vshrl.u32 %v249, 7
        %v251 = vsub.s32 0, %v250
        %v252 = vrot.slane %v248, %v251
        %v257 = vunpack.c.l.b16 %v244
        %v258 = vunpack.c.l.b16 %v245
        %v259 = vunpack.c.l.b16 %v246
        %v260 = vunpack.c.l.b16 %v247
        %v261 = vpack.c.b16 %v258, %v257
        %v262 = vpack.c.b16 %v260, %v259
        %vm265 = vcmask 261120
        %v267 = vsel %vm265, %v243, 0
        %269 = vmatprep.subr.bf16.mxu0 0
        %270 = vmatpush1.bf16.msra.mxu0 0
        %271 = vmatprep.subr.bf16.mxu0 0
        %272 = vmatpush1.bf16.msra.mxu0 0
        %273 = vmatprep.subr.bf16.mxu0 0
        %274 = vmatpush1.bf16.msra.mxu0 0
        %275 = vmatprep.subr.bf16.mxu0 0
        %276 = vmatpush1.bf16.msra.mxu0 0
        %277 = vmatprep.subr.bf16.mxu0 0
        %278 = vmatpush1.bf16.msra.mxu0 0
        %279 = vmatprep.subr.bf16.mxu0 0
        %280 = vmatpush1.bf16.msra.mxu0 0
        %281 = vmatprep.subr.bf16.mxu0 0
        %282 = vmatpush1.bf16.msra.mxu0 %v262
        %283 = vmatprep.subr.bf16.mxu0 0
        %284 = vmatpush1.bf16.msra.mxu0 %v261
        %285 = vmatprep.subr.bf16.mxu0 0
        %286 = vmatpush2.bf16.msra.mxu0 0
        %287 = vmatprep.subr.bf16.mxu0 0
        %288 = vmatpush2.bf16.msra.mxu0 0
        %289 = vmatprep.subr.bf16.mxu0 0
        %290 = vmatpush2.bf16.msra.mxu0 0
        %291 = vmatprep.subr.bf16.mxu0 0
        %292 = vmatpush2.bf16.msra.mxu0 0
        %293 = vmatprep.subr.bf16.mxu0 0
        %294 = vmatpush2.bf16.msra.mxu0 0
        %295 = vmatprep.subr.bf16.mxu0 0
        %296 = vmatpush2.bf16.msra.mxu0 0
        %297 = vmatprep.subr.bf16.mxu0 0
        %298 = vmatpush2.bf16.msra.mxu0 0
        %299 = vmatprep.subr.bf16.mxu0 0
        %300 = vmatpush2.bf16.msra.mxu0 0
        %301 = vmatprep.mubr.bf16.mxu0 0
        %302 = vmatmul.mubr.bf16.gmra.mxu0 %v267
        %v303 = vpop.f32.mrf.mxu0
        %v304 = vadd.f32 %v252, %v303
        %v305 = vpop.f32.mrf.mxu0
        %v306 = vpop.f32.mrf.mxu0
        %v307 = vpop.f32.mrf.mxu0
        %308 = vdwg.mxu0
        %vm309 = vcmp.gt.f32.partialorder %v304, 0.0
        %v310 = vstv %s242
        %v311 = vmul.f32 %v310, %v304
        %v312 = vsel %vm309, %v304, %v311
        %v313 = vld [vmem:[#allocation5 + $0x10] sm:$0xf]
        %v314 = vld [vmem:[#allocation5 + $0x14] sm:$0xf]
        %v315 = vld [vmem:[#allocation5 + $0x18] sm:$0xf]
        %v316 = vld [vmem:[#allocation5 + $0x1c] sm:$0xf]
        %v317 = vpack.c.bf16 %v312, %v312
        %v318 = vld [vmem:[#allocation7 + $0x1] sm:$0x1]
        %v319 = vlaneseq
        %v320 = vshrl.u32 %v319, 7
        %v321 = vsub.s32 0, %v320
        %v322 = vrot.slane %v318, %v321
        %v327 = vunpack.c.l.b16 %v313
        %v328 = vunpack.c.l.b16 %v314
        %v329 = vunpack.c.l.b16 %v315
        %v330 = vunpack.c.l.b16 %v316
        %v331 = vpack.c.b16 %v328, %v327
        %v332 = vpack.c.b16 %v330, %v329
        %v336 = vsel %vm265, %v317, 0
        %338 = vmatprep.subr.bf16.mxu0 0
        %339 = vmatpush1.bf16.msra.mxu0 0
        %340 = vmatprep.subr.bf16.mxu0 0
        %341 = vmatpush1.bf16.msra.mxu0 0
        %342 = vmatprep.subr.bf16.mxu0 0
        %343 = vmatpush1.bf16.msra.mxu0 0
        %344 = vmatprep.subr.bf16.mxu0 0
        %345 = vmatpush1.bf16.msra.mxu0 0
        %346 = vmatprep.subr.bf16.mxu0 0
        %347 = vmatpush1.bf16.msra.mxu0 0
        %348 = vmatprep.subr.bf16.mxu0 0
        %349 = vmatpush1.bf16.msra.mxu0 0
        %350 = vmatprep.subr.bf16.mxu0 0
        %351 = vmatpush1.bf16.msra.mxu0 %v332
        %352 = vmatprep.subr.bf16.mxu0 0
        %353 = vmatpush1.bf16.msra.mxu0 %v331
        %354 = vmatprep.subr.bf16.mxu0 0
        %355 = vmatpush2.bf16.msra.mxu0 0
        %356 = vmatprep.subr.bf16.mxu0 0
        %357 = vmatpush2.bf16.msra.mxu0 0
        %358 = vmatprep.subr.bf16.mxu0 0
        %359 = vmatpush2.bf16.msra.mxu0 0
        %360 = vmatprep.subr.bf16.mxu0 0
        %361 = vmatpush2.bf16.msra.mxu0 0
        %362 = vmatprep.subr.bf16.mxu0 0
        %363 = vmatpush2.bf16.msra.mxu0 0
        %364 = vmatprep.subr.bf16.mxu0 0
        %365 = vmatpush2.bf16.msra.mxu0 0
        %366 = vmatprep.subr.bf16.mxu0 0
        %367 = vmatpush2.bf16.msra.mxu0 0
        %368 = vmatprep.subr.bf16.mxu0 0
        %369 = vmatpush2.bf16.msra.mxu0 0
        %370 = vmatprep.mubr.bf16.mxu0 0
        %371 = vmatmul.mubr.bf16.gmra.mxu0 %v336
        %v372 = vpop.f32.mrf.mxu0
        %v373 = vadd.f32 %v322, %v372
        %v374 = vpop.f32.mrf.mxu0
        %v375 = vpop.f32.mrf.mxu0
        %v376 = vpop.f32.mrf.mxu0
        %377 = vdwg.mxu0
        %vm378 = vcmp.gt.f32.partialorder %v373, 0.0
        %v379 = vmul.f32 %v310, %v373
        %v380 = vsel %vm378, %v373, %v379
        %v381 = vld [vmem:[#allocation5 + $0x20] sm:$0xf]
        %v382 = vld [vmem:[#allocation5 + $0x24] sm:$0xf]
        %v383 = vld [vmem:[#allocation5 + $0x28] sm:$0xf]
        %v384 = vld [vmem:[#allocation5 + $0x2c] sm:$0xf]
        %v385 = vld [vmem:[#allocation5 + $0x30] sm:$0xf]
        %v386 = vld [vmem:[#allocation5 + $0x34] sm:$0xf]
        %v387 = vld [vmem:[#allocation5 + $0x38] sm:$0xf]
        %v388 = vld [vmem:[#allocation5 + $0x3c] sm:$0xf]
        %v389 = vpack.c.bf16 %v380, %v380
        %v390 = vld [vmem:[#allocation7 + $0x2] sm:$0x1]
        %v391 = vlaneseq
        %v392 = vshrl.u32 %v391, 7
        %v393 = vsub.s32 0, %v392
        %v394 = vrot.slane %v390, %v393
        %v403 = vunpack.c.l.b16 %v381
        %v404 = vunpack.c.l.b16 %v382
        %v405 = vunpack.c.l.b16 %v383
        %v406 = vunpack.c.l.b16 %v384
        %v407 = vunpack.c.l.b16 %v385
        %v408 = vunpack.c.l.b16 %v386
        %v409 = vunpack.c.l.b16 %v387
        %v410 = vunpack.c.l.b16 %v388
        %v411 = vpack.c.b16 %v404, %v403
        %v412 = vpack.c.b16 %v406, %v405
        %v413 = vpack.c.b16 %v408, %v407
        %v414 = vpack.c.b16 %v410, %v409
        %vm419 = vcmask 523264
        %v421 = vsel %vm419, %v389, 0
        %423 = vmatprep.subr.bf16.mxu0 0
        %424 = vmatpush1.bf16.msra.mxu0 0
        %425 = vmatprep.subr.bf16.mxu0 0
        %426 = vmatpush1.bf16.msra.mxu0 0
        %427 = vmatprep.subr.bf16.mxu0 0
        %428 = vmatpush1.bf16.msra.mxu0 0
        %429 = vmatprep.subr.bf16.mxu0 0
        %430 = vmatpush1.bf16.msra.mxu0 0
        %431 = vmatprep.subr.bf16.mxu0 0
        %432 = vmatpush1.bf16.msra.mxu0 %v414
        %433 = vmatprep.subr.bf16.mxu0 0
        %434 = vmatpush1.bf16.msra.mxu0 %v413
        %435 = vmatprep.subr.bf16.mxu0 0
        %436 = vmatpush1.bf16.msra.mxu0 %v412
        %437 = vmatprep.subr.bf16.mxu0 0
        %438 = vmatpush1.bf16.msra.mxu0 %v411
        %439 = vmatprep.subr.bf16.mxu0 0
        %440 = vmatpush2.bf16.msra.mxu0 0
        %441 = vmatprep.subr.bf16.mxu0 0
        %442 = vmatpush2.bf16.msra.mxu0 0
        %443 = vmatprep.subr.bf16.mxu0 0
        %444 = vmatpush2.bf16.msra.mxu0 0
        %445 = vmatprep.subr.bf16.mxu0 0
        %446 = vmatpush2.bf16.msra.mxu0 0
        %447 = vmatprep.subr.bf16.mxu0 0
        %448 = vmatpush2.bf16.msra.mxu0 0
        %449 = vmatprep.subr.bf16.mxu0 0
        %450 = vmatpush2.bf16.msra.mxu0 0
        %451 = vmatprep.subr.bf16.mxu0 0
        %452 = vmatpush2.bf16.msra.mxu0 0
        %453 = vmatprep.subr.bf16.mxu0 0
        %454 = vmatpush2.bf16.msra.mxu0 0
        %455 = vmatprep.mubr.bf16.mxu0 0
        %456 = vmatmul.mubr.bf16.gmra.mxu0 %v421
        %v457 = vpop.f32.mrf.mxu0
        %v458 = vadd.f32 %v394, %v457
        %v459 = vpop.f32.mrf.mxu0
        %v460 = vpop.f32.mrf.mxu0
        %v461 = vpop.f32.mrf.mxu0
        %462 = vdwg.mxu0
        %vm463 = vcmp.gt.f32.partialorder %v458, 0.0
        %v464 = vmul.f32 %v310, %v458
        %v465 = vsel %vm463, %v458, %v464
        %v466 = vld [vmem:[#allocation5 + $0x40] sm:$0xf]
        %v467 = vld [vmem:[#allocation5 + $0x44] sm:$0xf]
        %v468 = vld [vmem:[#allocation5 + $0x48] sm:$0xf]
        %v469 = vld [vmem:[#allocation5 + $0x4c] sm:$0xf]
        %v470 = vld [vmem:[#allocation5 + $0x50] sm:$0xf]
        %v471 = vld [vmem:[#allocation5 + $0x54] sm:$0xf]
        %v472 = vld [vmem:[#allocation5 + $0x58] sm:$0xf]
        %v473 = vld [vmem:[#allocation5 + $0x5c] sm:$0xf]
        %v474 = vpack.c.bf16 %v465, %v465
        %v475 = vld [vmem:[#allocation7 + $0x3] sm:$0x1]
        %v476 = vlaneseq
        %v477 = vshrl.u32 %v476, 7
        %v478 = vsub.s32 0, %v477
        %v479 = vrot.slane %v475, %v478
        %v488 = vunpack.c.l.b16 %v466
        %v489 = vunpack.c.l.b16 %v467
        %v490 = vunpack.c.l.b16 %v468
        %v491 = vunpack.c.l.b16 %v469
        %v492 = vunpack.c.l.b16 %v470
        %v493 = vunpack.c.l.b16 %v471
        %v494 = vunpack.c.l.b16 %v472
        %v495 = vunpack.c.l.b16 %v473
        %v496 = vpack.c.b16 %v489, %v488
        %v497 = vpack.c.b16 %v491, %v490
        %v498 = vpack.c.b16 %v493, %v492
        %v499 = vpack.c.b16 %v495, %v494
        %v505 = vsel %vm419, %v474, 0
        %507 = vmatprep.subr.bf16.mxu0 0
        %508 = vmatpush1.bf16.msra.mxu0 0
        %509 = vmatprep.subr.bf16.mxu0 0
        %510 = vmatpush1.bf16.msra.mxu0 0
        %511 = vmatprep.subr.bf16.mxu0 0
        %512 = vmatpush1.bf16.msra.mxu0 0
        %513 = vmatprep.subr.bf16.mxu0 0
        %514 = vmatpush1.bf16.msra.mxu0 0
        %515 = vmatprep.subr.bf16.mxu0 0
        %516 = vmatpush1.bf16.msra.mxu0 %v499
        %517 = vmatprep.subr.bf16.mxu0 0
        %518 = vmatpush1.bf16.msra.mxu0 %v498
        %519 = vmatprep.subr.bf16.mxu0 0
        %520 = vmatpush1.bf16.msra.mxu0 %v497
        %521 = vmatprep.subr.bf16.mxu0 0
        %522 = vmatpush1.bf16.msra.mxu0 %v496
        %523 = vmatprep.subr.bf16.mxu0 0
        %524 = vmatpush2.bf16.msra.mxu0 0
        %525 = vmatprep.subr.bf16.mxu0 0
        %526 = vmatpush2.bf16.msra.mxu0 0
        %527 = vmatprep.subr.bf16.mxu0 0
        %528 = vmatpush2.bf16.msra.mxu0 0
        %529 = vmatprep.subr.bf16.mxu0 0
        %530 = vmatpush2.bf16.msra.mxu0 0
        %531 = vmatprep.subr.bf16.mxu0 0
        %532 = vmatpush2.bf16.msra.mxu0 0
        %533 = vmatprep.subr.bf16.mxu0 0
        %534 = vmatpush2.bf16.msra.mxu0 0
        %535 = vmatprep.subr.bf16.mxu0 0
        %536 = vmatpush2.bf16.msra.mxu0 0
        %537 = vmatprep.subr.bf16.mxu0 0
        %538 = vmatpush2.bf16.msra.mxu0 0
        %539 = vmatprep.mubr.bf16.mxu0 0
        %540 = vmatmul.mubr.bf16.gmra.mxu0 %v505
        %v541 = vpop.f32.mrf.mxu0
        %v542 = vadd.f32 %v479, %v541
        %v543 = vpop.f32.mrf.mxu0
        %v544 = vpop.f32.mrf.mxu0
        %v545 = vpop.f32.mrf.mxu0
        %546 = vdwg.mxu0
        %vm547 = vcmp.gt.f32.partialorder %v542, 0.0
        %v548 = vmul.f32 %v310, %v542
        %v549 = vsel %vm547, %v542, %v548
        %v550 = vld [vmem:[#allocation5 + $0x60] sm:$0xf]
        %v551 = vld [vmem:[#allocation5 + $0x64] sm:$0xf]
        %v552 = vld [vmem:[#allocation5 + $0x68] sm:$0xf]
        %v553 = vld [vmem:[#allocation5 + $0x6c] sm:$0xf]
        %v554 = vld [vmem:[#allocation5 + $0x70] sm:$0xf]
        %v555 = vld [vmem:[#allocation5 + $0x74] sm:$0xf]
        %v556 = vld [vmem:[#allocation5 + $0x78] sm:$0xf]
        %v557 = vld [vmem:[#allocation5 + $0x7c] sm:$0xf]
        %v558 = vpack.c.bf16 %v549, %v549
        %v559 = vld [vmem:[#allocation7 + $0x4] sm:$0x1]
        %v560 = vlaneseq
        %v561 = vshrl.u32 %v560, 7
        %v562 = vsub.s32 0, %v561
        %v563 = vrot.slane %v559, %v562
        %v572 = vunpack.c.l.b16 %v550
        %v573 = vunpack.c.l.b16 %v551
        %v574 = vunpack.c.l.b16 %v552
        %v575 = vunpack.c.l.b16 %v553
        %v576 = vunpack.c.l.b16 %v554
        %v577 = vunpack.c.l.b16 %v555
        %v578 = vunpack.c.l.b16 %v556
        %v579 = vunpack.c.l.b16 %v557
        %v580 = vpack.c.b16 %v573, %v572
        %v581 = vpack.c.b16 %v575, %v574
        %v582 = vpack.c.b16 %v577, %v576
        %v583 = vpack.c.b16 %v579, %v578
        %v589 = vsel %vm419, %v558, 0
        %591 = vmatprep.subr.bf16.mxu0 0
        %592 = vmatpush1.bf16.msra.mxu0 0
        %593 = vmatprep.subr.bf16.mxu0 0
        %594 = vmatpush1.bf16.msra.mxu0 0
        %595 = vmatprep.subr.bf16.mxu0 0
        %596 = vmatpush1.bf16.msra.mxu0 0
        %597 = vmatprep.subr.bf16.mxu0 0
        %598 = vmatpush1.bf16.msra.mxu0 0
        %599 = vmatprep.subr.bf16.mxu0 0
        %600 = vmatpush1.bf16.msra.mxu0 %v583
        %601 = vmatprep.subr.bf16.mxu0 0
        %602 = vmatpush1.bf16.msra.mxu0 %v582
        %603 = vmatprep.subr.bf16.mxu0 0
        %604 = vmatpush1.bf16.msra.mxu0 %v581
        %605 = vmatprep.subr.bf16.mxu0 0
        %606 = vmatpush1.bf16.msra.mxu0 %v580
        %607 = vmatprep.subr.bf16.mxu0 0
        %608 = vmatpush2.bf16.msra.mxu0 0
        %609 = vmatprep.subr.bf16.mxu0 0
        %610 = vmatpush2.bf16.msra.mxu0 0
        %611 = vmatprep.subr.bf16.mxu0 0
        %612 = vmatpush2.bf16.msra.mxu0 0
        %613 = vmatprep.subr.bf16.mxu0 0
        %614 = vmatpush2.bf16.msra.mxu0 0
        %615 = vmatprep.subr.bf16.mxu0 0
        %616 = vmatpush2.bf16.msra.mxu0 0
        %617 = vmatprep.subr.bf16.mxu0 0
        %618 = vmatpush2.bf16.msra.mxu0 0
        %619 = vmatprep.subr.bf16.mxu0 0
        %620 = vmatpush2.bf16.msra.mxu0 0
        %621 = vmatprep.subr.bf16.mxu0 0
        %622 = vmatpush2.bf16.msra.mxu0 0
        %623 = vmatprep.mubr.bf16.mxu0 0
        %624 = vmatmul.mubr.bf16.gmra.mxu0 %v589
        %v625 = vpop.f32.mrf.mxu0
        %v626 = vadd.f32 %v563, %v625
        %v627 = vpop.f32.mrf.mxu0
        %v628 = vpop.f32.mrf.mxu0
        %v629 = vpop.f32.mrf.mxu0
        %630 = vdwg.mxu0
        %vm631 = vcmp.gt.f32.partialorder %v626, 0.0
        %v632 = vmul.f32 %v310, %v626
        %v633 = vsel %vm631, %v626, %v632
        %v634 = vld [vmem:[#allocation5 + $0x80] sm:$0xf]
        %v635 = vld [vmem:[#allocation5 + $0x84] sm:$0xf]
        %v636 = vld [vmem:[#allocation5 + $0x88] sm:$0xf]
        %v637 = vld [vmem:[#allocation5 + $0x8c] sm:$0xf]
        %v638 = vld [vmem:[#allocation5 + $0x90] sm:$0xf]
        %v639 = vld [vmem:[#allocation5 + $0x94] sm:$0xf]
        %v640 = vld [vmem:[#allocation5 + $0x98] sm:$0xf]
        %v641 = vld [vmem:[#allocation5 + $0x9c] sm:$0xf]
        %v642 = vpack.c.bf16 %v633, %v633
        %v643 = vld [vmem:[#allocation7 + $0x5] sm:$0x1]
        %v644 = vlaneseq
        %v645 = vshrl.u32 %v644, 7
        %v646 = vsub.s32 0, %v645
        %v647 = vrot.slane %v643, %v646
        %v656 = vunpack.c.l.b16 %v634
        %v657 = vunpack.c.l.b16 %v635
        %v658 = vunpack.c.l.b16 %v636
        %v659 = vunpack.c.l.b16 %v637
        %v660 = vunpack.c.l.b16 %v638
        %v661 = vunpack.c.l.b16 %v639
        %v662 = vunpack.c.l.b16 %v640
        %v663 = vunpack.c.l.b16 %v641
        %v664 = vpack.c.b16 %v657, %v656
        %v665 = vpack.c.b16 %v659, %v658
        %v666 = vpack.c.b16 %v661, %v660
        %v667 = vpack.c.b16 %v663, %v662
        %v673 = vsel %vm419, %v642, 0
        %675 = vmatprep.subr.bf16.mxu0 0
        %676 = vmatpush1.bf16.msra.mxu0 0
        %677 = vmatprep.subr.bf16.mxu0 0
        %678 = vmatpush1.bf16.msra.mxu0 0
        %679 = vmatprep.subr.bf16.mxu0 0
        %680 = vmatpush1.bf16.msra.mxu0 0
        %681 = vmatprep.subr.bf16.mxu0 0
        %682 = vmatpush1.bf16.msra.mxu0 0
        %683 = vmatprep.subr.bf16.mxu0 0
        %684 = vmatpush1.bf16.msra.mxu0 %v667
        %685 = vmatprep.subr.bf16.mxu0 0
        %686 = vmatpush1.bf16.msra.mxu0 %v666
        %687 = vmatprep.subr.bf16.mxu0 0
        %688 = vmatpush1.bf16.msra.mxu0 %v665
        %689 = vmatprep.subr.bf16.mxu0 0
        %690 = vmatpush1.bf16.msra.mxu0 %v664
        %691 = vmatprep.subr.bf16.mxu0 0
        %692 = vmatpush2.bf16.msra.mxu0 0
        %693 = vmatprep.subr.bf16.mxu0 0
        %694 = vmatpush2.bf16.msra.mxu0 0
        %695 = vmatprep.subr.bf16.mxu0 0
        %696 = vmatpush2.bf16.msra.mxu0 0
        %697 = vmatprep.subr.bf16.mxu0 0
        %698 = vmatpush2.bf16.msra.mxu0 0
        %699 = vmatprep.subr.bf16.mxu0 0
        %700 = vmatpush2.bf16.msra.mxu0 0
        %701 = vmatprep.subr.bf16.mxu0 0
        %702 = vmatpush2.bf16.msra.mxu0 0
        %703 = vmatprep.subr.bf16.mxu0 0
        %704 = vmatpush2.bf16.msra.mxu0 0
        %705 = vmatprep.subr.bf16.mxu0 0
        %706 = vmatpush2.bf16.msra.mxu0 0
        %707 = vmatprep.mubr.bf16.mxu0 0
        %708 = vmatmul.mubr.bf16.gmra.mxu0 %v673
        %v709 = vpop.f32.mrf.mxu0
        %v710 = vadd.f32 %v647, %v709
        %v711 = vpop.f32.mrf.mxu0
        %v712 = vpop.f32.mrf.mxu0
        %v713 = vpop.f32.mrf.mxu0
        %714 = vdwg.mxu0
        %vm715 = vcmp.gt.f32.partialorder %v710, 0.0
        %v716 = vmul.f32 %v310, %v710
        %v717 = vsel %vm715, %v710, %v716
        %v718 = vld [vmem:[#allocation5 + $0xa0] sm:$0xf]
        %v719 = vld [vmem:[#allocation5 + $0xa4] sm:$0xf]
        %v720 = vld [vmem:[#allocation5 + $0xa8] sm:$0xf]
        %v721 = vld [vmem:[#allocation5 + $0xac] sm:$0xf]
        %v722 = vld [vmem:[#allocation5 + $0xb0] sm:$0xf]
        %v723 = vld [vmem:[#allocation5 + $0xb4] sm:$0xf]
        %v724 = vld [vmem:[#allocation5 + $0xb8] sm:$0xf]
        %v725 = vld [vmem:[#allocation5 + $0xbc] sm:$0xf]
        %v726 = vpack.c.bf16 %v717, %v717
        %v727 = vld [vmem:[#allocation7 + $0x6] sm:$0x1]
        %v728 = vlaneseq
        %v729 = vshrl.u32 %v728, 7
        %v730 = vsub.s32 0, %v729
        %v731 = vrot.slane %v727, %v730
        %v740 = vunpack.c.l.b16 %v718
        %v741 = vunpack.c.l.b16 %v719
        %v742 = vunpack.c.l.b16 %v720
        %v743 = vunpack.c.l.b16 %v721
        %v744 = vunpack.c.l.b16 %v722
        %v745 = vunpack.c.l.b16 %v723
        %v746 = vunpack.c.l.b16 %v724
        %v747 = vunpack.c.l.b16 %v725
        %v748 = vpack.c.b16 %v741, %v740
        %v749 = vpack.c.b16 %v743, %v742
        %v750 = vpack.c.b16 %v745, %v744
        %v751 = vpack.c.b16 %v747, %v746
        %v757 = vsel %vm419, %v726, 0
        %759 = vmatprep.subr.bf16.mxu0 0
        %760 = vmatpush1.bf16.msra.mxu0 0
        %761 = vmatprep.subr.bf16.mxu0 0
        %762 = vmatpush1.bf16.msra.mxu0 0
        %763 = vmatprep.subr.bf16.mxu0 0
        %764 = vmatpush1.bf16.msra.mxu0 0
        %765 = vmatprep.subr.bf16.mxu0 0
        %766 = vmatpush1.bf16.msra.mxu0 0
        %767 = vmatprep.subr.bf16.mxu0 0
        %768 = vmatpush1.bf16.msra.mxu0 %v751
        %769 = vmatprep.subr.bf16.mxu0 0
        %770 = vmatpush1.bf16.msra.mxu0 %v750
        %771 = vmatprep.subr.bf16.mxu0 0
        %772 = vmatpush1.bf16.msra.mxu0 %v749
        %773 = vmatprep.subr.bf16.mxu0 0
        %774 = vmatpush1.bf16.msra.mxu0 %v748
        %775 = vmatprep.subr.bf16.mxu0 0
        %776 = vmatpush2.bf16.msra.mxu0 0
        %777 = vmatprep.subr.bf16.mxu0 0
        %778 = vmatpush2.bf16.msra.mxu0 0
        %779 = vmatprep.subr.bf16.mxu0 0
        %780 = vmatpush2.bf16.msra.mxu0 0
        %781 = vmatprep.subr.bf16.mxu0 0
        %782 = vmatpush2.bf16.msra.mxu0 0
        %783 = vmatprep.subr.bf16.mxu0 0
        %784 = vmatpush2.bf16.msra.mxu0 0
        %785 = vmatprep.subr.bf16.mxu0 0
        %786 = vmatpush2.bf16.msra.mxu0 0
        %787 = vmatprep.subr.bf16.mxu0 0
        %788 = vmatpush2.bf16.msra.mxu0 0
        %789 = vmatprep.subr.bf16.mxu0 0
        %790 = vmatpush2.bf16.msra.mxu0 0
        %791 = vmatprep.mubr.bf16.mxu0 0
        %792 = vmatmul.mubr.bf16.gmra.mxu0 %v757
        %v793 = vpop.f32.mrf.mxu0
        %v794 = vadd.f32 %v731, %v793
        %v795 = vpop.f32.mrf.mxu0
        %v796 = vpop.f32.mrf.mxu0
        %v797 = vpop.f32.mrf.mxu0
        %798 = vdwg.mxu0
        %vm799 = vcmp.gt.f32.partialorder %v794, 0.0
        %v800 = vmul.f32 %v310, %v794
        %v801 = vsel %vm799, %v794, %v800
        %v802 = vld [vmem:[#allocation5 + $0xc0] sm:$0xf]
        %v803 = vld [vmem:[#allocation5 + $0xc4] sm:$0xf]
        %v804 = vld [vmem:[#allocation5 + $0xc8] sm:$0xf]
        %v805 = vld [vmem:[#allocation5 + $0xcc] sm:$0xf]
        %v806 = vpack.c.bf16 %v801, %v801
        %v807 = vld [vmem:[#allocation7 + $0x7] sm:$0x1]
        %v808 = vlaneseq
        %v809 = vshrl.u32 %v808, 7
        %v810 = vsub.s32 0, %v809
        %v811 = vrot.slane %v807, %v810
        %v816 = vunpack.c.l.b16 %v802
        %v817 = vunpack.c.l.b16 %v803
        %v818 = vunpack.c.l.b16 %v804
        %v819 = vunpack.c.l.b16 %v805
        %v820 = vpack.c.b16 %v817, %v816
        %v821 = vpack.c.b16 %v819, %v818
        %v825 = vsel %vm265, %v806, 0
        %827 = vmatprep.subr.bf16.mxu0 0
        %828 = vmatpush1.bf16.msra.mxu0 0
        %829 = vmatprep.subr.bf16.mxu0 0
        %830 = vmatpush1.bf16.msra.mxu0 0
        %831 = vmatprep.subr.bf16.mxu0 0
        %832 = vmatpush1.bf16.msra.mxu0 0
        %833 = vmatprep.subr.bf16.mxu0 0
        %834 = vmatpush1.bf16.msra.mxu0 0
        %835 = vmatprep.subr.bf16.mxu0 0
        %836 = vmatpush1.bf16.msra.mxu0 0
        %837 = vmatprep.subr.bf16.mxu0 0
        %838 = vmatpush1.bf16.msra.mxu0 0
        %839 = vmatprep.subr.bf16.mxu0 0
        %840 = vmatpush1.bf16.msra.mxu0 %v821
        %841 = vmatprep.subr.bf16.mxu0 0
        %842 = vmatpush1.bf16.msra.mxu0 %v820
        %843 = vmatprep.subr.bf16.mxu0 0
        %844 = vmatpush2.bf16.msra.mxu0 0
        %845 = vmatprep.subr.bf16.mxu0 0
        %846 = vmatpush2.bf16.msra.mxu0 0
        %847 = vmatprep.subr.bf16.mxu0 0
        %848 = vmatpush2.bf16.msra.mxu0 0
        %849 = vmatprep.subr.bf16.mxu0 0
        %850 = vmatpush2.bf16.msra.mxu0 0
        %851 = vmatprep.subr.bf16.mxu0 0
        %852 = vmatpush2.bf16.msra.mxu0 0
        %853 = vmatprep.subr.bf16.mxu0 0
        %854 = vmatpush2.bf16.msra.mxu0 0
        %855 = vmatprep.subr.bf16.mxu0 0
        %856 = vmatpush2.bf16.msra.mxu0 0
        %857 = vmatprep.subr.bf16.mxu0 0
        %858 = vmatpush2.bf16.msra.mxu0 0
        %859 = vmatprep.mubr.bf16.mxu0 0
        %860 = vmatmul.mubr.bf16.gmra.mxu0 %v825
        %v861 = vpop.f32.mrf.mxu0
        %v862 = vadd.f32 %v811, %v861
        %v863 = vpop.f32.mrf.mxu0
        %v864 = vpop.f32.mrf.mxu0
        %v865 = vpop.f32.mrf.mxu0
        %866 = vdwg.mxu0
        %vm867 = vcmask 64512
        %868 = vst.msk [vmem:[%s240] sm:$0xff] %vm867, %v862
        %p869 = scmp.lt.s32.totalorder %s20, 1
        %s870 = scalar_select %p869, %s20, 1
        %s871 = smul.addr %s870, 8
        %s872 = scalar_lea.vmem %s4, %s871
        // Predicated region
        $region49: #{tpu_custom_call.1} parent=35 // pred_check
          %p873 = pneg %p127
        $region50: #{tpu_custom_call.1} parent=35 // pred_check_branch
          %875 = sbr.rel (%p873) target = $region52
        $region51: #{tpu_custom_call.1} parent=35 // pred_region
          _
        $region52: #{tpu_custom_call.1} parent=35 // pred_fallthru
          _
      $region36: #{tpu_custom_call.1} parent=5 // pred_fallthru
        _
      %p876 = scmp.le.s32.totalorder 2, %s15
      // Predicated region
      $region53: #{tpu_custom_call.1} parent=5 // pred_check
        %p877 = pneg %p876
      $region54: #{tpu_custom_call.1} parent=5 // pred_check_branch
        %879 = sbr.rel (%p877) target = $region56
      $region55: #{tpu_custom_call.1} parent=5 // pred_region
        %s880 = ssub.s32 %s15, 2
        // Predicated region
        $region57: #{tpu_custom_call.1} parent=55 // pred_check
          %p881 = pneg %p133
        $region58: #{tpu_custom_call.1} parent=55 // pred_check_branch
          %883 = sbr.rel (%p881) target = $region60
        $region59: #{tpu_custom_call.1} parent=55 // pred_region
          %p884 = scmp.lt.s32.totalorder %s21, 1
          %s885 = scalar_select %p884, %s21, 1
          %s886 = smul.addr %s885, 8
          %s887 = scalar_lea.vmem %s4, %s886
        $region60: #{tpu_custom_call.1} parent=55 // pred_fallthru
          _
      $region56: #{tpu_custom_call.1} parent=5 // pred_fallthru
        _
    $region6: #{tpu_custom_call.1} parent=1 // loop_footer
      %s19 = sadd.s32 1, %s15
    $region7: #{tpu_custom_call.1} parent=1 // loop_footer_branch
      %14 = sbr.rel target = $region3
    $region8: #{tpu_custom_call.1} parent=1 // loop_exit
      _
    %888 = vsyncpa [#allocation4], 1
    %s889 = scalar_lea.sflag [#allocation4], 1
    %890 = vsyncpa %s889, 1
    %891 = vsyncpa [#allocation6], 1

</llo_original>
